<compile_context>
chip_gen: v6e
topology: v6e:2x2x1
jax: 0.10.0
libtpu: 0.0.40
codegen_flags: <defaults>
</compile_context>

<pallas_src>
import jax
import jax.numpy as jnp
from jax.experimental import pallas as pl
from jax.experimental.pallas import tpu as pltpu


NEG_BIG = -1e30  # finite "-inf": keeps 0 * logp == 0 on padded label lanes


# ----------------------------- Pallas kernel -------------------------------

def _make_kernel(inv_seq, bf16_tanh):
    f32, bf16 = jnp.float32, jnp.bfloat16

    def _tanh(x_f32):
        # bf16 tanh halves EUP work on v6e/v7x; v5-class has no bf16 EUP.
        if bf16_tanh:
            return jnp.tanh(x_f32.astype(bf16)).astype(f32)
        return jnp.tanh(x_f32)

    def kernel(emb_ref, we_ref, be_ref, w1_ref, b1_ref, w2_ref, b2_ref,
               onehot_ref, logits_ref, nll_ref, pooled_ref):
        # emb_ref:    [TB, SC, Hp] bf16  token embeddings (batch x seq tile)
        # we_ref:     [Hp, Hp]     bf16  stand-in encoder weight   ([in, out])
        # be_ref:     [1, Hp]      f32   stand-in encoder bias
        # w1_ref:     [Hp, Hp]     bf16  output_layer_1 weight     ([in, out])
        # b1_ref:     [1, Hp]      f32   output_layer_1 bias
        # w2_ref:     [Hp, Lp]     bf16  output_layer_2 weight     ([in, out])
        # b2_ref:     [1, Lp]      f32   bias, NEG_BIG on padded label lanes
        # onehot_ref: [TB, Lp]     f32   one-hot(tgt), zero on padded lanes/rows
        # logits_ref: [TB, Lp]     f32   output (lane-dense store)
        # nll_ref:    [TB, 1]      f32   output, per-row NLL (partial losses)
        # pooled_ref: [TB, Hp]     f32   VMEM scratch (seq-sum accumulator)
        j = pl.program_id(1)

        @pl.when(j == 0)
        def _():
            pooled_ref[...] = jnp.zeros_like(pooled_ref)

        # ---- stand-in encoder on this seq chunk + running mean-pool sum ----
        # TODO(synk): real UER encoders (Transformer, ...) are external modules
        #             resolved via globals(); only a deterministic Linear+tanh
        #             stand-in is implemented here.
        tb, sc, hp = emb_ref.shape
        flat = emb_ref[...].reshape(tb * sc, hp)                 # bf16, tall M
        enc = jnp.dot(flat, we_ref[...],
                      preferred_element_type=jnp.float32) + be_ref[...]
        enc = _tanh(enc)                                         # f32 out
        pooled_ref[...] += enc.reshape(tb, sc, hp).sum(axis=1)

        # ---- head layers + loss, once per batch tile ------------------------
        @pl.when(j == pl.num_programs(1) - 1)
        def _():
            pooled = pooled_ref[...] * inv_seq                   # mean, f32

            h = _tanh(jnp.dot(pooled.astype(bf16), w1_ref[...],
                              preferred_element_type=jnp.float32) + b1_ref[...])

            logits = (jnp.dot(h.astype(bf16), w2_ref[...],
                              preferred_element_type=jnp.float32) + b2_ref[...])
            logits_ref[...] = logits                             # lane-dense

            # NLLLoss(LogSoftmax(logits), tgt), all f32.
            m = jnp.max(logits, axis=-1, keepdims=True)
            z = logits - m                 # padded lanes ~ -1e30 -> exp == 0
            lse = jnp.log(jnp.sum(jnp.exp(z), axis=-1, keepdims=True))
            logp = z - lse
            nll_ref[...] = -jnp.sum(onehot_ref[...] * logp, axis=-1,
                                    keepdims=True)               # [TB, 1]

    return kernel


# ------------------------------ tile selection ------------------------------

def _round_up(x, m):
    return pl.cdiv(x, m) * m


def _pick_config(B, S):
    try:
        kind = jax.devices()[0].device_kind.lower()
    except Exception:  # pragma: no cover
        kind = ""
    v5_like = any(t in kind for t in ("v2", "v3", "v4", "v5"))
    v7x = ("v7" in kind) or ("7x" in kind)

    # Batch tile: fill the MXU M edge on real batches, never exceed the
    # (padded) batch itself for toy sizes.
    tb_target = 128 if v5_like else 256
    TB = min(tb_target, max(8, _round_up(B, 8)))

    # Seq chunk: aim for TB * s_chunk ~ 2048 rows in the encoder matmul.
    # Must divide S and be a multiple of 8 (or equal S) for the (8,128) rule.
    cap = max(8, 2048 // TB)
    if S <= cap:
        s_chunk = S
    else:
        s_chunk = S
        for d in range(min(S, cap), 7, -1):
            if S % d == 0 and d % 8 == 0:
                s_chunk = d
                break

    # VMEM budget: v7x has 64 MiB physical, v5e/v6e 128 MiB.
    # TODO(synk): set pipeline_mode=pl.Buffered(1) on the grid-invariant
    #             weight specs to reclaim their second buffer on v7x.
    if v7x:
        vmem_limit = 48 << 20
    elif v5_like:
        vmem_limit = 64 << 20
    else:
        vmem_limit = 96 << 20

    bf16_tanh = not v5_like
    return TB, s_chunk, vmem_limit, bf16_tanh


# ------------------------------- wrapper ------------------------------------

def classifier_forward(emb, we, be, w1, b1, w2, b2, tgt_onehot, *, tb=None,
                       s_chunk=None):
    """emb: [B,S,H] or lane-padded bf16 [B,S,Hp]; weights [in,out]; biases 1-D;
    one-hot [B,L].  Returns (mean NLL loss scalar, logits [B,L] f32)."""
    f32, bf16 = jnp.float32, jnp.bfloat16

    B, S = emb.shape[0], emb.shape[1]
    H = we.shape[0]
    L = w2.shape[1]
    Hp = _round_up(H, 128)
    Lp = _round_up(L, 128)

    TB_auto, sc_auto, vmem_limit, bf16_tanh = _pick_config(B, S)
    TB = tb if tb is not None else TB_auto
    s_chunk = s_chunk if s_chunk is not None else sc_auto
    assert S % s_chunk == 0, "s_chunk must divide S"
    # TODO(synk): ragged / non-divisible seq lengths need cdiv + masking.
    Bp = _round_up(B, TB)

    # emb: fast path when the producer already emitted lane-padded bf16.
    if emb.shape[-1] == Hp:
        emb_p = emb.astype(bf16)
    else:
        assert emb.shape[-1] == H
        emb_p = jnp.pad(emb, ((0, 0), (0, 0), (0, Hp - H))).astype(bf16)
    if Bp != B:
        emb_p = jnp.pad(emb_p, ((0, Bp - B), (0, 0), (0, 0)))

    # Weights / biases: matmul operands -> bf16, biases stay f32.
    we_p = jnp.pad(we, ((0, Hp - H), (0, Hp - H))).astype(bf16)
    w1_p = jnp.pad(w1, ((0, Hp - H), (0, Hp - H))).astype(bf16)
    w2_p = jnp.pad(w2, ((0, Hp - H), (0, Lp - L))).astype(bf16)
    be_p = jnp.pad(be, (0, Hp - H)).astype(f32)[None, :]
    b1_p = jnp.pad(b1, (0, Hp - H)).astype(f32)[None, :]
    b2_p = jnp.pad(b2.astype(f32), (0, Lp - L),
                   constant_values=NEG_BIG)[None, :]
    # TODO(synk): optionally pass int32 targets via scalar prefetch and build
    #             the one-hot in-kernel to avoid the Lp-amplified HBM stream.
    onehot_p = jnp.pad(tgt_onehot, ((0, Bp - B), (0, Lp - L))).astype(f32)

    kernel = _make_kernel(1.0 / S, bf16_tanh)
    const = lambda i, j: (0, 0)                 # resident weights / biases

    logits_p, nll = pl.pallas_call(
        kernel,
        out_shape=(
            jax.ShapeDtypeStruct((Bp, Lp), f32),     # logits (lane-dense)
            jax.ShapeDtypeStruct((Bp, 1), f32),      # per-row NLL
        ),
        grid_spec=pltpu.PrefetchScalarGridSpec(
            num_scalar_prefetch=0,
            grid=(Bp // TB, S // s_chunk),
            in_specs=[
                pl.BlockSpec((TB, s_chunk, Hp), lambda i, j: (i, j, 0)),  # emb
                pl.BlockSpec((Hp, Hp), const),                            # we
                pl.BlockSpec((1, Hp), const),                             # be
                pl.BlockSpec((Hp, Hp), const),                            # w1
                pl.BlockSpec((1, Hp), const),                             # b1
                pl.BlockSpec((Hp, Lp), const),                            # w2
                pl.BlockSpec((1, Lp), const),                             # b2
                pl.BlockSpec((TB, Lp), lambda i, j: (i, 0)),              # 1hot
            ],
            out_specs=(
                pl.BlockSpec((TB, Lp), lambda i, j: (i, 0)),              # logits
                pl.BlockSpec((TB, 1), lambda i, j: (i, 0)),               # nll
            ),
            scratch_shapes=[pltpu.VMEM((TB, Hp), jnp.float32)],           # pooled
        ),
        compiler_params=pltpu.CompilerParams(
            # batch tiles are independent (per-tile NLL output) -> "parallel";
            # seq axis is the mean-pool reduction -> "arbitrary".
            dimension_semantics=("parallel", "arbitrary"),
            vmem_limit_bytes=vmem_limit,
        ),
    )(emb_p, we_p, be_p, w1_p, b1_p, w2_p, b2_p, onehot_p)

    loss = jnp.sum(nll[:B, 0]) / B
    return loss, logits_p[:B, :L]


# ------------------------------- glue / setup ------------------------------

def make_params(key, vocab, seq, hidden, labels):
    ks = jax.random.split(key, 9)
    scale = 0.02
    word_emb = scale * jax.random.normal(ks[0], (vocab, hidden), jnp.float32)
    pos_emb = scale * jax.random.normal(ks[1], (seq, hidden), jnp.float32)
    seg_emb = scale * jax.random.normal(ks[2], (3, hidden), jnp.float32)
    we = scale * jax.random.normal(ks[3], (hidden, hidden), jnp.float32)
    be = scale * jax.random.normal(ks[4], (hidden,), jnp.float32)
    w1 = scale * jax.random.normal(ks[5], (hidden, hidden), jnp.float32)
    b1 = scale * jax.random.normal(ks[6], (hidden,), jnp.float32)
    w2 = scale * jax.random.normal(ks[7], (labels, hidden), jnp.float32)
    b2 = scale * jax.random.normal(ks[8], (labels,), jnp.float32)
    return word_emb, pos_emb, seg_emb, we, be, w1, b1, w2, b2


def embed_padded_bf16(src, seg, word_emb, pos_emb, seg_emb, Hp):
    """Plain-JAX glue: embedding gather with pad + bf16 cast fused into the
    producer, so the kernel input is already a lane-dense bf16 [B, S, Hp]."""
    H = word_emb.shape[1]
    S = src.shape[1]
    pad = ((0, 0), (0, Hp - H))
    we_p = jnp.pad(word_emb, pad)
    pe_p = jnp.pad(pos_emb, pad)
    se_p = jnp.pad(seg_emb, pad)
    return (we_p[src] + pe_p[None, :S, :] + se_p[seg]).astype(jnp.bfloat16)


def reference(emb, we, be, w1, b1, w2, b2, tgt):
    enc = jnp.tanh(jnp.einsum('bsh,hd->bsd', emb, we) + be[None, :])
    pooled = jnp.mean(enc, axis=1)
    h = jnp.tanh(pooled @ w1 + b1)
    logits = h @ w2 + b2
    logp = jax.nn.log_softmax(logits, axis=-1)
    loss = -jnp.mean(jnp.take_along_axis(logp, tgt[:, None], axis=1))
    return loss, logits


if __name__ == "__main__":
    B, S, H, L, V = 2, 8, 32, 4, 64
    Hp = pl.cdiv(H, 128) * 128

    key = jax.random.PRNGKey(0)
    kp, ks, kg, kt = jax.random.split(key, 4)
    word_emb, pos_emb, seg_emb, we_t, be, w1_t, b1, w2_t, b2 = make_params(
        kp, V, S, H, L)

    src = jax.random.randint(ks, (B, S), 0, V, jnp.int32)
    seg = jax.random.randint(kg, (B, S), 1, 3, jnp.int32)
    tgt = jax.random.randint(kt, (B,), 0, L, jnp.int32)

    # Producer emits lane-padded bf16 emb (no standalone pad/cast pass).
    emb_p = embed_padded_bf16(src, seg, word_emb, pos_emb, seg_emb, Hp)
    tgt_onehot = jax.nn.one_hot(tgt, L, dtype=jnp.float32)     # [B, L]

    # Kernel expects [in, out] weights and 1-D biases.
    we, w1, w2 = we_t.T, w1_t.T, w2_t.T

    loss, logits = classifier_forward(emb_p, we, be, w1, b1, w2, b2, tgt_onehot)
    jax.block_until_ready((loss, logits))

    emb_f32 = emb_p[:, :, :H].astype(jnp.float32)              # same data as kernel
    ref_loss, ref_logits = reference(emb_f32, we, be, w1, b1, w2, b2, tgt)
    assert jnp.allclose(logits, ref_logits, rtol=2e-2, atol=2e-2), "logits mismatch"
    assert jnp.allclose(loss, ref_loss, rtol=2e-2, atol=2e-2), "loss mismatch"

    print("KERNEL_OK")
</pallas_src>

<mosaic_0001>
module attributes {stable_mosaic.version = 11 : i64} {
  func.func @kernel(%arg0: i32, %arg1: i32, %arg2: memref<8x8x128xbf16, #tpu.memory_space<vmem>>, %arg3: memref<128x128xbf16, #tpu.memory_space<vmem>>, %arg4: memref<1x128xf32, #tpu.memory_space<vmem>>, %arg5: memref<128x128xbf16, #tpu.memory_space<vmem>>, %arg6: memref<1x128xf32, #tpu.memory_space<vmem>>, %arg7: memref<128x128xbf16, #tpu.memory_space<vmem>>, %arg8: memref<1x128xf32, #tpu.memory_space<vmem>>, %arg9: memref<8x128xf32, #tpu.memory_space<vmem>>, %arg10: memref<8x128xf32, #tpu.memory_space<vmem>>, %arg11: memref<8x1xf32, #tpu.memory_space<vmem>>, %arg12: memref<8x128xf32, #tpu.memory_space<vmem>>) attributes {dimension_semantics = [#tpu.dimension_semantics<parallel>, #tpu.dimension_semantics<arbitrary>], iteration_bounds = array<i64: 1, 1>, scalar_prefetch = 0 : i64, scratch_operands = 1 : i64, tpu.core_type = #tpu.core_type<tc>, window_params = [{transform_indices = @transform_0, window_bounds = array<i64: 8, 8, 128>}, {pipeline_mode = #tpu.pipeline_mode<synchronous>, transform_indices = @transform_1, window_bounds = array<i64: 128, 128>}, {pipeline_mode = #tpu.pipeline_mode<synchronous>, transform_indices = @transform_2, window_bounds = array<i64: 1, 128>}, {pipeline_mode = #tpu.pipeline_mode<synchronous>, transform_indices = @transform_3, window_bounds = array<i64: 128, 128>}, {pipeline_mode = #tpu.pipeline_mode<synchronous>, transform_indices = @transform_4, window_bounds = array<i64: 1, 128>}, {pipeline_mode = #tpu.pipeline_mode<synchronous>, transform_indices = @transform_5, window_bounds = array<i64: 128, 128>}, {pipeline_mode = #tpu.pipeline_mode<synchronous>, transform_indices = @transform_6, window_bounds = array<i64: 1, 128>}, {transform_indices = @transform_7, window_bounds = array<i64: 8, 128>}, {transform_indices = @transform_8, window_bounds = array<i64: 8, 128>}, {transform_indices = @transform_9, window_bounds = array<i64: 8, 1>}]} {
    %c0_i32 = arith.constant 0 : i32
    %0 = arith.cmpi eq, %arg1, %c0_i32 : i32
    %1 = arith.extui %0 : i1 to i32
    %c0_i32_0 = arith.constant 0 : i32
    %2 = arith.cmpi ne, %1, %c0_i32_0 : i32
    scf.if %2 {
      %cst_14 = arith.constant 0.000000e+00 : f32
      %21 = vector.broadcast %cst_14 : f32 to vector<8x128xf32>
      %c0_15 = arith.constant 0 : index
      %c0_16 = arith.constant 0 : index
      %22 = vector.load %arg12[%c0_15, %c0_16] : memref<8x128xf32, #tpu.memory_space<vmem>>, vector<8x128xf32>
      tpu.vector_store %arg12[%c0_15, %c0_16], %21 {strides = array<i32>} : memref<8x128xf32, #tpu.memory_space<vmem>>, vector<8x128xf32>,
    } else {
    }
    %c0 = arith.constant 0 : index
    %c0_1 = arith.constant 0 : index
    %c0_2 = arith.constant 0 : index
    %3 = vector.load %arg2[%c0, %c0_1, %c0_2] : memref<8x8x128xbf16, #tpu.memory_space<vmem>>, vector<8x8x128xbf16>
    %4 = vector.shape_cast %3 : vector<8x8x128xbf16> to vector<64x128xbf16>
    %c0_3 = arith.constant 0 : index
    %c0_4 = arith.constant 0 : index
    %5 = vector.load %arg3[%c0_3, %c0_4] : memref<128x128xbf16, #tpu.memory_space<vmem>>, vector<128x128xbf16>
    %cst = arith.constant dense<0.000000e+00> : vector<64x128xf32>
    %6 = tpu.matmul %4, %5, %cst {dimension_numbers = #tpu.dot_dimension_numbers<[1], [0], [0], [1], [0, 0, 1, 1], [], []>} : vector<64x128xbf16>, vector<128x128xbf16>, vector<64x128xf32> -> vector<64x128xf32>
    %c0_5 = arith.constant 0 : index
    %c0_6 = arith.constant 0 : index
    %7 = vector.load %arg4[%c0_5, %c0_6] : memref<1x128xf32, #tpu.memory_space<vmem>>, vector<1x128xf32>
    %8 = vector.broadcast %7 : vector<1x128xf32> to vector<64x128xf32>
    %9 = arith.addf %6, %8 : vector<64x128xf32>
    %10 = arith.truncf %9 : vector<64x128xf32> to vector<64x128xbf16>
    %11 = math.tanh %10 : vector<64x128xbf16>
    %12 = arith.extf %11 : vector<64x128xbf16> to vector<64x128xf32>
    %c0_7 = arith.constant 0 : index
    %c0_8 = arith.constant 0 : index
    %13 = vector.load %arg12[%c0_7, %c0_8] : memref<8x128xf32, #tpu.memory_space<vmem>>, vector<8x128xf32>
    %14 = vector.shape_cast %12 : vector<64x128xf32> to vector<8x8x128xf32>
    %cst_9 = arith.constant dense<0.000000e+00> : vector<8x128xf32>
    %15 = vector.multi_reduction <add>, %14, %cst_9 [1] : vector<8x8x128xf32> to vector<8x128xf32>
    %16 = arith.addf %13, %15 : vector<8x128xf32>
    %c0_10 = arith.constant 0 : index
    %c0_11 = arith.constant 0 : index
    %17 = vector.load %arg12[%c0_10, %c0_11] : memref<8x128xf32, #tpu.memory_space<vmem>>, vector<8x128xf32>
    tpu.vector_store %arg12[%c0_10, %c0_11], %16 {strides = array<i32>} : memref<8x128xf32, #tpu.memory_space<vmem>>, vector<8x128xf32>,
    %c0_i32_12 = arith.constant 0 : i32
    %18 = arith.cmpi eq, %arg1, %c0_i32_12 : i32
    %19 = arith.extui %18 : i1 to i32
    %c0_i32_13 = arith.constant 0 : i32
    %20 = arith.cmpi ne, %19, %c0_i32_13 : i32
    scf.if %20 {
      %c0_14 = arith.constant 0 : index
      %c0_15 = arith.constant 0 : index
      %21 = vector.load %arg12[%c0_14, %c0_15] : memref<8x128xf32, #tpu.memory_space<vmem>>, vector<8x128xf32>
      %cst_16 = arith.constant 1.250000e-01 : f32
      %22 = vector.broadcast %cst_16 : f32 to vector<8x128xf32>
      %23 = arith.mulf %21, %22 : vector<8x128xf32>
      %24 = arith.truncf %23 : vector<8x128xf32> to vector<8x128xbf16>
      %c0_17 = arith.constant 0 : index
      %c0_18 = arith.constant 0 : index
      %25 = vector.load %arg5[%c0_17, %c0_18] : memref<128x128xbf16, #tpu.memory_space<vmem>>, vector<128x128xbf16>
      %cst_19 = arith.constant dense<0.000000e+00> : vector<8x128xf32>
      %26 = tpu.matmul %24, %25, %cst_19 {dimension_numbers = #tpu.dot_dimension_numbers<[1], [0], [0], [1], [0, 0, 1, 1], [], []>} : vector<8x128xbf16>, vector<128x128xbf16>, vector<8x128xf32> -> vector<8x128xf32>
      %c0_20 = arith.constant 0 : index
      %c0_21 = arith.constant 0 : index
      %27 = vector.load %arg6[%c0_20, %c0_21] : memref<1x128xf32, #tpu.memory_space<vmem>>, vector<1x128xf32>
      %28 = vector.broadcast %27 : vector<1x128xf32> to vector<8x128xf32>
      %29 = arith.addf %26, %28 : vector<8x128xf32>
      %30 = arith.truncf %29 : vector<8x128xf32> to vector<8x128xbf16>
      %31 = math.tanh %30 : vector<8x128xbf16>
      %32 = arith.extf %31 : vector<8x128xbf16> to vector<8x128xf32>
      %33 = arith.truncf %32 : vector<8x128xf32> to vector<8x128xbf16>
      %c0_22 = arith.constant 0 : index
      %c0_23 = arith.constant 0 : index
      %34 = vector.load %arg7[%c0_22, %c0_23] : memref<128x128xbf16, #tpu.memory_space<vmem>>, vector<128x128xbf16>
      %cst_24 = arith.constant dense<0.000000e+00> : vector<8x128xf32>
      %35 = tpu.matmul %33, %34, %cst_24 {dimension_numbers = #tpu.dot_dimension_numbers<[1], [0], [0], [1], [0, 0, 1, 1], [], []>} : vector<8x128xbf16>, vector<128x128xbf16>, vector<8x128xf32> -> vector<8x128xf32>
      %c0_25 = arith.constant 0 : index
      %c0_26 = arith.constant 0 : index
      %36 = vector.load %arg8[%c0_25, %c0_26] : memref<1x128xf32, #tpu.memory_space<vmem>>, vector<1x128xf32>
      %37 = vector.broadcast %36 : vector<1x128xf32> to vector<8x128xf32>
      %38 = arith.addf %35, %37 : vector<8x128xf32>
      %c0_27 = arith.constant 0 : index
      %c0_28 = arith.constant 0 : index
      %39 = vector.load %arg10[%c0_27, %c0_28] : memref<8x128xf32, #tpu.memory_space<vmem>>, vector<8x128xf32>
      tpu.vector_store %arg10[%c0_27, %c0_28], %38 {strides = array<i32>} : memref<8x128xf32, #tpu.memory_space<vmem>>, vector<8x128xf32>,
      %cst_29 = arith.constant dense<0xFF800000> : vector<8xf32>
      %40 = vector.multi_reduction <maximumf>, %38, %cst_29 [1] : vector<8x128xf32> to vector<8xf32>
      %41 = vector.shape_cast %40 : vector<8xf32> to vector<8x1xf32>
      %42 = vector.broadcast %41 : vector<8x1xf32> to vector<8x128xf32>
      %43 = arith.subf %38, %42 : vector<8x128xf32>
      %44 = math.exp %43 : vector<8x128xf32>
      %cst_30 = arith.constant dense<0.000000e+00> : vector<8xf32>
      %45 = vector.multi_reduction <add>, %44, %cst_30 [1] : vector<8x128xf32> to vector<8xf32>
      %46 = vector.shape_cast %45 : vector<8xf32> to vector<8x1xf32>
      %47 = math.log %46 : vector<8x1xf32>
      %48 = vector.broadcast %47 : vector<8x1xf32> to vector<8x128xf32>
      %49 = arith.subf %43, %48 : vector<8x128xf32>
      %c0_31 = arith.constant 0 : index
      %c0_32 = arith.constant 0 : index
      %50 = vector.load %arg9[%c0_31, %c0_32] : memref<8x128xf32, #tpu.memory_space<vmem>>, vector<8x128xf32>
      %51 = arith.mulf %50, %49 : vector<8x128xf32>
      %cst_33 = arith.constant dense<0.000000e+00> : vector<8xf32>
      %52 = vector.multi_reduction <add>, %51, %cst_33 [1] : vector<8x128xf32> to vector<8xf32>
      %53 = vector.shape_cast %52 : vector<8xf32> to vector<8x1xf32>
      %cst_34 = arith.constant 0.000000e+00 : f32
      %54 = vector.broadcast %cst_34 : f32 to vector<8x1xf32>
      %55 = arith.subf %54, %53 : vector<8x1xf32>
      %c0_35 = arith.constant 0 : index
      %c0_36 = arith.constant 0 : index
      %56 = vector.load %arg11[%c0_35, %c0_36] : memref<8x1xf32, #tpu.memory_space<vmem>>, vector<8x1xf32>
      tpu.vector_store %arg11[%c0_35, %c0_36], %55 {strides = array<i32>} : memref<8x1xf32, #tpu.memory_space<vmem>>, vector<8x1xf32>,
    } else {
    }
    return
  }
  func.func @transform_0(%arg0: i32, %arg1: i32) -> (i32, i32, i32) {
    %c0_i32 = arith.constant 0 : i32
    %c0_i32_0 = arith.constant 0 : i32
    return %arg0, %arg1, %c0_i32 : i32, i32, i32
  }
  func.func @transform_1(%arg0: i32, %arg1: i32) -> (i32, i32) {
    %c0_i32 = arith.constant 0 : i32
    %c0_i32_0 = arith.constant 0 : i32
    %c0_i32_1 = arith.constant 0 : i32
    return %c0_i32, %c0_i32_0 : i32, i32
  }
  func.func @transform_2(%arg0: i32, %arg1: i32) -> (i32, i32) {
    %c0_i32 = arith.constant 0 : i32
    %c0_i32_0 = arith.constant 0 : i32
    %c0_i32_1 = arith.constant 0 : i32
    return %c0_i32, %c0_i32_0 : i32, i32
  }
  func.func @transform_3(%arg0: i32, %arg1: i32) -> (i32, i32) {
    %c0_i32 = arith.constant 0 : i32
    %c0_i32_0 = arith.constant 0 : i32
    %c0_i32_1 = arith.constant 0 : i32
    return %c0_i32, %c0_i32_0 : i32, i32
  }
  func.func @transform_4(%arg0: i32, %arg1: i32) -> (i32, i32) {
    %c0_i32 = arith.constant 0 : i32
    %c0_i32_0 = arith.constant 0 : i32
    %c0_i32_1 = arith.constant 0 : i32
    return %c0_i32, %c0_i32_0 : i32, i32
  }
  func.func @transform_5(%arg0: i32, %arg1: i32) -> (i32, i32) {
    %c0_i32 = arith.constant 0 : i32
    %c0_i32_0 = arith.constant 0 : i32
    %c0_i32_1 = arith.constant 0 : i32
    return %c0_i32, %c0_i32_0 : i32, i32
  }
  func.func @transform_6(%arg0: i32, %arg1: i32) -> (i32, i32) {
    %c0_i32 = arith.constant 0 : i32
    %c0_i32_0 = arith.constant 0 : i32
    %c0_i32_1 = arith.constant 0 : i32
    return %c0_i32, %c0_i32_0 : i32, i32
  }
  func.func @transform_7(%arg0: i32, %arg1: i32) -> (i32, i32) {
    %c0_i32 = arith.constant 0 : i32
    %c0_i32_0 = arith.constant 0 : i32
    return %arg0, %c0_i32 : i32, i32
  }
  func.func @transform_8(%arg0: i32, %arg1: i32) -> (i32, i32) {
    %c0_i32 = arith.constant 0 : i32
    %c0_i32_0 = arith.constant 0 : i32
    return %arg0, %c0_i32 : i32, i32
  }
  func.func @transform_9(%arg0: i32, %arg1: i32) -> (i32, i32) {
    %c0_i32 = arith.constant 0 : i32
    %c0_i32_0 = arith.constant 0 : i32
    return %arg0, %c0_i32 : i32, i32
  }
}

</mosaic_0001>

<llo_original>
// kernel: tpu_custom_call.1
$region0: #{tpu_custom_call.1}
  #allocation0 [shape = 'u32[]', space=smem, size = 0x4, offset = 0x4, fixed_abs, tag = 'smem constant byte address 0x4 - core index']
  #allocation1 [shape = 'u32[144,128]{1,0:T(1,128)}', space=vmem, size = 0x12000, scoped, tag = 'internal scratch']
  #allocation2 [shape = 'f32[8,128]{1,0:T(8,128)}', space=vmem, size = 0x1000, scoped, tag = 'scratch operand']
  %s0 = inlined_call_operand.hbm [shape: bf16[8,8,128], index: 0, kind: input, shape index: {}]
  %s1 = inlined_call_operand.hbm [shape: bf16[128,128], index: 1, kind: input, shape index: {}]
  %s2 = inlined_call_operand.vmem [shape: f32[1,128], index: 2, kind: input, shape index: {}]
  %s3 = inlined_call_operand.hbm [shape: bf16[128,128], index: 3, kind: input, shape index: {}]
  %s4 = inlined_call_operand.vmem [shape: f32[1,128], index: 4, kind: input, shape index: {}]
  %s5 = inlined_call_operand.hbm [shape: bf16[128,128], index: 5, kind: input, shape index: {}]
  %s6 = inlined_call_operand.vmem [shape: f32[1,128], index: 6, kind: input, shape index: {}]
  %s7 = inlined_call_operand.vmem [shape: f32[8,128], index: 7, kind: input, shape index: {}]
  %s8 = inlined_call_operand.hbm [shape: f32[8,128], index: 8, kind: output, shape index: {0}]
  %s9 = inlined_call_operand.vmem [shape: f32[8,1], index: 9, kind: output, shape index: {1}]
  %10 = xla_tuple %s8, %s9
  %s11 = sld [smem:[#allocation0]]
  $region74: #{tpu_custom_call.1} parent=0
    _
  %s13 = ssub.s32 1, %s11
  %s14 = scalar_select 0, %s13, %s11
  $region1: #{tpu_custom_call.1} parent=0
    #allocation3 [shape = 'u8[16384]{0}', space=vmem, size = 0x4000, scoped, tag = 'input window, operand 0, single buffered']
    #allocation4 [shape = 's32[1]{0}', space=sflag, size = 0x4, scoped, tag = 'scoped memory for tpu_custom_call.1']
    #allocation5 [shape = 's32[1]{0}', space=sflag, size = 0x4, scoped, tag = 'scoped memory for tpu_custom_call.1']
    #allocation6 [shape = 'u8[32768]{0}', space=vmem, size = 0x8000, scoped, tag = 'input window, operand 1, single buffered']
    #allocation7 [shape = 's32[1]{0}', space=sflag, size = 0x4, scoped, tag = 'scoped memory for tpu_custom_call.1']
    #allocation8 [shape = 'u8[32768]{0}', space=vmem, size = 0x8000, scoped, tag = 'input window, operand 3, single buffered']
    #allocation9 [shape = 'u8[32768]{0}', space=vmem, size = 0x8000, scoped, tag = 'input window, operand 5, single buffered']
    #allocation10 [shape = 's32[1]{0}', space=sflag, size = 0x4, scoped, tag = 'scoped memory for tpu_custom_call.1']
    #allocation11 [shape = 'u8[4096]{0}', space=vmem, size = 0x1000, scoped, tag = 'output window, operand 0, single buffered']
    %15 = vsyncpa [#allocation4], 0
    %16 = vsyncpa [#allocation7], 0
    %17 = vsyncpa [#allocation10], 0
    %18 = vsyncpa [#allocation5], 0
    // Predicated region
    $region2: #{tpu_custom_call.1} parent=1 // pred_check
      _
    $region3: #{tpu_custom_call.1} parent=1 // pred_check_branch
      %20 = sbr.rel (0) target = $region5
    $region4: #{tpu_custom_call.1} parent=1 // pred_region
      %s22 = ssub.s32 512, 512
      %23 = vsyncadd [#allocation4], %s22
      %s24 = sshll.u32 [#allocation3], 4
      %s25 = int_to_ptr.vmem [resolvable:$true] %s24
      %30 = dma.hbm_to_vmem [thread:$0]  %s0, 512, %s25, [#allocation4], 64, 64, 4
    $region5: #{tpu_custom_call.1} parent=1 // pred_fallthru
      _
    // Predicated region
    $region6: #{tpu_custom_call.1} parent=1 // pred_check
      _
    $region7: #{tpu_custom_call.1} parent=1 // pred_check_branch
      %32 = sbr.rel (0) target = $region9
    $region8: #{tpu_custom_call.1} parent=1 // pred_region
      %s34 = ssub.s32 1024, 1024
      %35 = vsyncadd [#allocation7], %s34
      %s36 = sshll.u32 [#allocation6], 4
      %s37 = int_to_ptr.vmem [resolvable:$true] %s36
      %42 = dma.hbm_to_vmem [thread:$0]  %s1, 1024, %s37, [#allocation7], 64, 64, 4
    $region9: #{tpu_custom_call.1} parent=1 // pred_fallthru
      _
    // Predicated region
    $region10: #{tpu_custom_call.1} parent=1 // pred_check
      _
    $region11: #{tpu_custom_call.1} parent=1 // pred_check_branch
      %44 = sbr.rel (0) target = $region13
    $region12: #{tpu_custom_call.1} parent=1 // pred_region
      _
    $region13: #{tpu_custom_call.1} parent=1 // pred_fallthru
      _
    // Predicated region
    $region14: #{tpu_custom_call.1} parent=1 // pred_check
      _
    $region15: #{tpu_custom_call.1} parent=1 // pred_check_branch
      %46 = sbr.rel (0) target = $region17
    $region16: #{tpu_custom_call.1} parent=1 // pred_region
      %s48 = ssub.s32 1024, 1024
      %49 = vsyncadd [#allocation7], %s48
      %s50 = sshll.u32 [#allocation8], 4
      %s51 = int_to_ptr.vmem [resolvable:$true] %s50
      %56 = dma.hbm_to_vmem [thread:$0]  %s3, 1024, %s51, [#allocation7], 64, 64, 4
    $region17: #{tpu_custom_call.1} parent=1 // pred_fallthru
      _
    // Predicated region
    $region18: #{tpu_custom_call.1} parent=1 // pred_check
      _
    $region19: #{tpu_custom_call.1} parent=1 // pred_check_branch
      %58 = sbr.rel (0) target = $region21
    $region20: #{tpu_custom_call.1} parent=1 // pred_region
      _
    $region21: #{tpu_custom_call.1} parent=1 // pred_fallthru
      _
    // Predicated region
    $region22: #{tpu_custom_call.1} parent=1 // pred_check
      _
    $region23: #{tpu_custom_call.1} parent=1 // pred_check_branch
      %60 = sbr.rel (0) target = $region25
    $region24: #{tpu_custom_call.1} parent=1 // pred_region
      %s62 = ssub.s32 1024, 1024
      %63 = vsyncadd [#allocation10], %s62
      %s64 = sshll.u32 [#allocation9], 4
      %s65 = int_to_ptr.vmem [resolvable:$true] %s64
      %70 = dma.hbm_to_vmem [thread:$0]  %s5, 1024, %s65, [#allocation10], 64, 64, 4
    $region25: #{tpu_custom_call.1} parent=1 // pred_fallthru
      _
    // Predicated region
    $region26: #{tpu_custom_call.1} parent=1 // pred_check
      _
    $region27: #{tpu_custom_call.1} parent=1 // pred_check_branch
      %72 = sbr.rel (0) target = $region29
    $region28: #{tpu_custom_call.1} parent=1 // pred_region
      _
    $region29: #{tpu_custom_call.1} parent=1 // pred_fallthru
      _
    // Predicated region
    $region30: #{tpu_custom_call.1} parent=1 // pred_check
      _
    $region31: #{tpu_custom_call.1} parent=1 // pred_check_branch
      %74 = sbr.rel (0) target = $region33
    $region32: #{tpu_custom_call.1} parent=1 // pred_region
      _
    $region33: #{tpu_custom_call.1} parent=1 // pred_fallthru
      _
    // Predicated region
    $region34: #{tpu_custom_call.1} parent=1 // pred_check
      _
    $region35: #{tpu_custom_call.1} parent=1 // pred_check_branch
      %76 = sbr.rel (0) target = $region37
    $region36: #{tpu_custom_call.1} parent=1 // pred_region
      %77 = dma.done [#allocation4], 512
    $region37: #{tpu_custom_call.1} parent=1 // pred_fallthru
      _
    // Predicated region
    $region38: #{tpu_custom_call.1} parent=1 // pred_check
      _
    $region39: #{tpu_custom_call.1} parent=1 // pred_check_branch
      %79 = sbr.rel (0) target = $region41
    $region40: #{tpu_custom_call.1} parent=1 // pred_region
      %80 = dma.done [#allocation7], 1024
    $region41: #{tpu_custom_call.1} parent=1 // pred_fallthru
      _
    // Predicated region
    $region42: #{tpu_custom_call.1} parent=1 // pred_check
      _
    $region43: #{tpu_custom_call.1} parent=1 // pred_check_branch
      %82 = sbr.rel (0) target = $region45
    $region44: #{tpu_custom_call.1} parent=1 // pred_region
      %83 = dma.done [#allocation7], 1024
    $region45: #{tpu_custom_call.1} parent=1 // pred_fallthru
      _
    // Predicated region
    $region46: #{tpu_custom_call.1} parent=1 // pred_check
      _
    $region47: #{tpu_custom_call.1} parent=1 // pred_check_branch
      %85 = sbr.rel (0) target = $region49
    $region48: #{tpu_custom_call.1} parent=1 // pred_region
      %86 = dma.done [#allocation10], 1024
    $region49: #{tpu_custom_call.1} parent=1 // pred_fallthru
      _
    %p88 = scmp.eq.s32.totalorder 0, 0
    // Predicated region
    $region50: #{tpu_custom_call.1} parent=1 // pred_check
      %p89 = pneg %p88
    $region51: #{tpu_custom_call.1} parent=1 // pred_check_branch
      %91 = sbr.rel (%p89) target = $region53
    $region52: #{tpu_custom_call.1} parent=1 // pred_region
      %92 = vst [vmem:[#allocation2] sm:$0xff] 0.0
    $region53: #{tpu_custom_call.1} parent=1 // pred_fallthru
      _
    %v93 = vld [vmem:[#allocation3] sm:$0xf]
    %v94 = vld [vmem:[#allocation3 + $0x4] sm:$0xf]
    %v95 = vld [vmem:[#allocation3 + $0x8] sm:$0xf]
    %v96 = vld [vmem:[#allocation3 + $0xc] sm:$0xf]
    %v97 = vld [vmem:[#allocation3 + $0x10] sm:$0xf]
    %v98 = vld [vmem:[#allocation3 + $0x14] sm:$0xf]
    %v99 = vld [vmem:[#allocation3 + $0x18] sm:$0xf]
    %v100 = vld [vmem:[#allocation3 + $0x1c] sm:$0xf]
    %v101 = vld [vmem:[#allocation6] sm:$0xf]
    %v102 = vld [vmem:[#allocation6 + $0x4] sm:$0xf]
    %v103 = vld [vmem:[#allocation6 + $0x8] sm:$0xf]
    %v104 = vld [vmem:[#allocation6 + $0xc] sm:$0xf]
    %v105 = vld [vmem:[#allocation6 + $0x10] sm:$0xf]
    %v106 = vld [vmem:[#allocation6 + $0x14] sm:$0xf]
    %v107 = vld [vmem:[#allocation6 + $0x18] sm:$0xf]
    %v108 = vld [vmem:[#allocation6 + $0x1c] sm:$0xf]
    %v109 = vld [vmem:[#allocation6 + $0x20] sm:$0xf]
    %v110 = vld [vmem:[#allocation6 + $0x24] sm:$0xf]
    %v111 = vld [vmem:[#allocation6 + $0x28] sm:$0xf]
    %v112 = vld [vmem:[#allocation6 + $0x2c] sm:$0xf]
    %v113 = vld [vmem:[#allocation6 + $0x30] sm:$0xf]
    %v114 = vld [vmem:[#allocation6 + $0x34] sm:$0xf]
    %v115 = vld [vmem:[#allocation6 + $0x38] sm:$0xf]
    %v116 = vld [vmem:[#allocation6 + $0x3c] sm:$0xf]
    %v117 = vld [vmem:[%s2] sm:$0x1]
    %v119 = vlaneseq
    %v120 = vshrl.u32 %v119, 7
    %v121 = vsub.s32 0, %v120
    %v122 = vrot.slane %v117, %v121
    %v132 = vunpack.c.l.b16 %v93
    %v133 = vunpack.c.l.b16 %v94
    %v134 = vunpack.c.l.b16 %v95
    %v135 = vunpack.c.l.b16 %v96
    %v136 = vunpack.c.l.b16 %v97
    %v137 = vunpack.c.l.b16 %v98
    %v138 = vunpack.c.l.b16 %v99
    %v139 = vunpack.c.l.b16 %v100
    %v140 = vpack.c.b16 %v133, %v132
    %v141 = vpack.c.b16 %v135, %v134
    %v142 = vpack.c.b16 %v137, %v136
    %v143 = vpack.c.b16 %v139, %v138
    %v164 = vunpack.c.l.b16 %v101
    %v165 = vunpack.c.l.b16 %v102
    %v166 = vunpack.c.l.b16 %v103
    %v167 = vunpack.c.l.b16 %v104
    %v168 = vunpack.c.l.b16 %v105
    %v169 = vunpack.c.l.b16 %v106
    %v170 = vunpack.c.l.b16 %v107
    %v171 = vunpack.c.l.b16 %v108
    %v172 = vunpack.c.l.b16 %v109
    %v173 = vunpack.c.l.b16 %v110
    %v174 = vunpack.c.l.b16 %v111
    %v175 = vunpack.c.l.b16 %v112
    %v176 = vunpack.c.l.b16 %v113
    %v177 = vunpack.c.l.b16 %v114
    %v178 = vunpack.c.l.b16 %v115
    %v179 = vunpack.c.l.b16 %v116
    %v180 = vpack.c.b16 %v165, %v164
    %v181 = vpack.c.b16 %v167, %v166
    %v182 = vpack.c.b16 %v169, %v168
    %v183 = vpack.c.b16 %v171, %v170
    %v184 = vpack.c.b16 %v173, %v172
    %v185 = vpack.c.b16 %v175, %v174
    %v186 = vpack.c.b16 %v177, %v176
    %v187 = vpack.c.b16 %v179, %v178
    %196 = vmatprep.subr.bf16.mxu0 0
    %197 = vmatpush1.bf16.msra.mxu0 %v187
    %198 = vmatprep.subr.bf16.mxu0 0
    %199 = vmatpush1.bf16.msra.mxu0 %v186
    %200 = vmatprep.subr.bf16.mxu0 0
    %201 = vmatpush1.bf16.msra.mxu0 %v185
    %202 = vmatprep.subr.bf16.mxu0 0
    %203 = vmatpush1.bf16.msra.mxu0 %v184
    %204 = vmatprep.subr.bf16.mxu0 0
    %205 = vmatpush1.bf16.msra.mxu0 %v183
    %206 = vmatprep.subr.bf16.mxu0 0
    %207 = vmatpush1.bf16.msra.mxu0 %v182
    %208 = vmatprep.subr.bf16.mxu0 0
    %209 = vmatpush1.bf16.msra.mxu0 %v181
    %210 = vmatprep.subr.bf16.mxu0 0
    %211 = vmatpush1.bf16.msra.mxu0 %v180
    %212 = vmatprep.subr.bf16.mxu0 0
    %213 = vmatpush2.bf16.msra.mxu0 0
    %214 = vmatprep.subr.bf16.mxu0 0
    %215 = vmatpush2.bf16.msra.mxu0 0
    %216 = vmatprep.subr.bf16.mxu0 0
    %217 = vmatpush2.bf16.msra.mxu0 0
    %218 = vmatprep.subr.bf16.mxu0 0
    %219 = vmatpush2.bf16.msra.mxu0 0
    %220 = vmatprep.subr.bf16.mxu0 0
    %221 = vmatpush2.bf16.msra.mxu0 0
    %222 = vmatprep.subr.bf16.mxu0 0
    %223 = vmatpush2.bf16.msra.mxu0 0
    %224 = vmatprep.subr.bf16.mxu0 0
    %225 = vmatpush2.bf16.msra.mxu0 0
    %226 = vmatprep.subr.bf16.mxu0 0
    %227 = vmatpush2.bf16.msra.mxu0 0
    %228 = vmatprep.mubr.bf16.mxu0 0
    %229 = vmatmul.mubr.bf16.gmra.mxu0 %v140
    %v230 = vpop.f32.mrf.mxu0
    %v231 = vadd.f32 %v122, %v230
    %v232 = vpop.f32.mrf.mxu0
    %v233 = vpop.f32.mrf.mxu0
    %v234 = vadd.f32 %v122, %v233
    %v235 = vpop.f32.mrf.mxu0
    %236 = vmatprep.mubr.bf16.mxu0 0
    %237 = vmatmul.mubr.bf16.gmra.mxu0 %v141
    %v238 = vpop.f32.mrf.mxu0
    %v239 = vadd.f32 %v122, %v238
    %v240 = vpop.f32.mrf.mxu0
    %v241 = vpop.f32.mrf.mxu0
    %v242 = vadd.f32 %v122, %v241
    %v243 = vpop.f32.mrf.mxu0
    %244 = vmatprep.mubr.bf16.mxu0 0
    %245 = vmatmul.mubr.bf16.gmra.mxu0 %v142
    %v246 = vpop.f32.mrf.mxu0
    %v247 = vadd.f32 %v122, %v246
    %v248 = vpop.f32.mrf.mxu0
    %v249 = vpop.f32.mrf.mxu0
    %v250 = vadd.f32 %v122, %v249
    %v251 = vpop.f32.mrf.mxu0
    %252 = vmatprep.mubr.bf16.mxu0 0
    %253 = vmatmul.mubr.bf16.gmra.mxu0 %v143
    %v254 = vpop.f32.mrf.mxu0
    %v255 = vadd.f32 %v122, %v254
    %v256 = vpop.f32.mrf.mxu0
    %v257 = vpop.f32.mrf.mxu0
    %v258 = vadd.f32 %v122, %v257
    %v259 = vpop.f32.mrf.mxu0
    %260 = vdwg.mxu0
    %v261 = vpack.c.bf16 %v234, %v231
    %v262 = vpack.c.bf16 %v242, %v239
    %v263 = vpack.c.bf16 %v250, %v247
    %v264 = vpack.c.bf16 %v258, %v255
    %v265 = vtanh.bf16.pop %v261
    %v266 = vtanh.bf16.pop %v262
    %v267 = vtanh.bf16.pop %v263
    %v268 = vtanh.bf16.pop %v264
    %v269 = vunpack.c.l.bf16 %v265
    %v270 = vunpack.c.h.bf16 %v265
    %v271 = vunpack.c.l.bf16 %v266
    %v272 = vunpack.c.h.bf16 %v266
    %v273 = vunpack.c.l.bf16 %v267
    %v274 = vunpack.c.h.bf16 %v267
    %v275 = vunpack.c.l.bf16 %v268
    %v276 = vunpack.c.h.bf16 %v268
    %v277 = vld [vmem:[#allocation2] sm:$0xff]
    %v278 = vrot.slane %v269, 4
    %v279 = vadd.f32 %v269, %v278
    %v280 = vrot.slane %v279, 2
    %v281 = vadd.f32 %v279, %v280
    %v282 = vrot.slane %v281, 1
    %v283 = vadd.f32 %v281, %v282
    %v284 = vrot.slane %v270, 4
    %v285 = vadd.f32 %v270, %v284
    %v286 = vrot.slane %v285, 2
    %v287 = vadd.f32 %v285, %v286
    %v288 = vrot.slane %v287, 1
    %v289 = vadd.f32 %v287, %v288
    %v290 = vrot.slane %v271, 4
    %v291 = vadd.f32 %v271, %v290
    %v292 = vrot.slane %v291, 2
    %v293 = vadd.f32 %v291, %v292
    %v294 = vrot.slane %v293, 1
    %v295 = vadd.f32 %v293, %v294
    %v296 = vrot.slane %v272, 4
    %v297 = vadd.f32 %v272, %v296
    %v298 = vrot.slane %v297, 2
    %v299 = vadd.f32 %v297, %v298
    %v300 = vrot.slane %v299, 1
    %v301 = vadd.f32 %v299, %v300
    %v302 = vrot.slane %v273, 4
    %v303 = vadd.f32 %v273, %v302
    %v304 = vrot.slane %v303, 2
    %v305 = vadd.f32 %v303, %v304
    %v306 = vrot.slane %v305, 1
    %v307 = vadd.f32 %v305, %v306
    %v308 = vrot.slane %v274, 4
    %v309 = vadd.f32 %v274, %v308
    %v310 = vrot.slane %v309, 2
    %v311 = vadd.f32 %v309, %v310
    %v312 = vrot.slane %v311, 1
    %v313 = vadd.f32 %v311, %v312
    %v314 = vrot.slane %v275, 4
    %v315 = vadd.f32 %v275, %v314
    %v316 = vrot.slane %v315, 2
    %v317 = vadd.f32 %v315, %v316
    %v318 = vrot.slane %v317, 1
    %v319 = vadd.f32 %v317, %v318
    %v320 = vrot.slane %v276, 4
    %v321 = vadd.f32 %v276, %v320
    %v322 = vrot.slane %v321, 2
    %v323 = vadd.f32 %v321, %v322
    %v324 = vrot.slane %v323, 1
    %v325 = vadd.f32 %v323, %v324
    %vm334 = vcmask 1041409
    %v335 = vsel %vm334, %v289, %v283
    %vm336 = vcmask 1042434
    %v337 = vsel %vm336, %v295, %v335
    %vm338 = vcmask 1043459
    %v339 = vsel %vm338, %v301, %v337
    %vm340 = vcmask 1044484
    %v341 = vsel %vm340, %v307, %v339
    %vm342 = vcmask 1045509
    %v343 = vsel %vm342, %v313, %v341
    %vm344 = vcmask 1046534
    %v345 = vsel %vm344, %v319, %v343
    %vm346 = vcmask 1047559
    %v347 = vsel %vm346, %v325, %v345
    %v349 = vadd.f32 %v277, %v347
    %350 = vst [vmem:[#allocation2] sm:$0xff] %v349
    // Predicated region
    $region54: #{tpu_custom_call.1} parent=1 // pred_check
      %p351 = pneg %p88
    $region55: #{tpu_custom_call.1} parent=1 // pred_check_branch
      %353 = sbr.rel (%p351) target = $region57
    $region56: #{tpu_custom_call.1} parent=1 // pred_region
      %v354 = vld [vmem:[#allocation2] sm:$0xff]
      %v355 = vmul.f32 %v354, 0.125
      %v356 = vpack.c.bf16 %v355, %v355
      %v357 = vld [vmem:[#allocation8] sm:$0xf]
      %v358 = vld [vmem:[#allocation8 + $0x4] sm:$0xf]
      %v359 = vld [vmem:[#allocation8 + $0x8] sm:$0xf]
      %v360 = vld [vmem:[#allocation8 + $0xc] sm:$0xf]
      %v361 = vld [vmem:[#allocation8 + $0x10] sm:$0xf]
      %v362 = vld [vmem:[#allocation8 + $0x14] sm:$0xf]
      %v363 = vld [vmem:[#allocation8 + $0x18] sm:$0xf]
      %v364 = vld [vmem:[#allocation8 + $0x1c] sm:$0xf]
      %v365 = vld [vmem:[#allocation8 + $0x20] sm:$0xf]
      %v366 = vld [vmem:[#allocation8 + $0x24] sm:$0xf]
      %v367 = vld [vmem:[#allocation8 + $0x28] sm:$0xf]
      %v368 = vld [vmem:[#allocation8 + $0x2c] sm:$0xf]
      %v369 = vld [vmem:[#allocation8 + $0x30] sm:$0xf]
      %v370 = vld [vmem:[#allocation8 + $0x34] sm:$0xf]
      %v371 = vld [vmem:[#allocation8 + $0x38] sm:$0xf]
      %v372 = vld [vmem:[#allocation8 + $0x3c] sm:$0xf]
      %v373 = vld [vmem:[%s4] sm:$0x1]
      %v375 = vlaneseq
      %v376 = vshrl.u32 %v375, 7
      %v377 = vsub.s32 0, %v376
      %v378 = vrot.slane %v373, %v377
      %v396 = vunpack.c.l.b16 %v357
      %v397 = vunpack.c.l.b16 %v358
      %v398 = vunpack.c.l.b16 %v359
      %v399 = vunpack.c.l.b16 %v360
      %v400 = vunpack.c.l.b16 %v361
      %v401 = vunpack.c.l.b16 %v362
      %v402 = vunpack.c.l.b16 %v363
      %v403 = vunpack.c.l.b16 %v364
      %v404 = vunpack.c.l.b16 %v365
      %v405 = vunpack.c.l.b16 %v366
      %v406 = vunpack.c.l.b16 %v367
      %v407 = vunpack.c.l.b16 %v368
      %v408 = vunpack.c.l.b16 %v369
      %v409 = vunpack.c.l.b16 %v370
      %v410 = vunpack.c.l.b16 %v371
      %v411 = vunpack.c.l.b16 %v372
      %v412 = vpack.c.b16 %v397, %v396
      %v413 = vpack.c.b16 %v399, %v398
      %v414 = vpack.c.b16 %v401, %v400
      %v415 = vpack.c.b16 %v403, %v402
      %v416 = vpack.c.b16 %v405, %v404
      %v417 = vpack.c.b16 %v407, %v406
      %v418 = vpack.c.b16 %v409, %v408
      %v419 = vpack.c.b16 %v411, %v410
      %428 = vmatprep.subr.bf16.mxu0 0
      %429 = vmatpush1.bf16.msra.mxu0 %v419
      %430 = vmatprep.subr.bf16.mxu0 0
      %431 = vmatpush1.bf16.msra.mxu0 %v418
      %432 = vmatprep.subr.bf16.mxu0 0
      %433 = vmatpush1.bf16.msra.mxu0 %v417
      %434 = vmatprep.subr.bf16.mxu0 0
      %435 = vmatpush1.bf16.msra.mxu0 %v416
      %436 = vmatprep.subr.bf16.mxu0 0
      %437 = vmatpush1.bf16.msra.mxu0 %v415
      %438 = vmatprep.subr.bf16.mxu0 0
      %439 = vmatpush1.bf16.msra.mxu0 %v414
      %440 = vmatprep.subr.bf16.mxu0 0
      %441 = vmatpush1.bf16.msra.mxu0 %v413
      %442 = vmatprep.subr.bf16.mxu0 0
      %443 = vmatpush1.bf16.msra.mxu0 %v412
      %444 = vmatprep.subr.bf16.mxu0 0
      %445 = vmatpush2.bf16.msra.mxu0 0
      %446 = vmatprep.subr.bf16.mxu0 0
      %447 = vmatpush2.bf16.msra.mxu0 0
      %448 = vmatprep.subr.bf16.mxu0 0
      %449 = vmatpush2.bf16.msra.mxu0 0
      %450 = vmatprep.subr.bf16.mxu0 0
      %451 = vmatpush2.bf16.msra.mxu0 0
      %452 = vmatprep.subr.bf16.mxu0 0
      %453 = vmatpush2.bf16.msra.mxu0 0
      %454 = vmatprep.subr.bf16.mxu0 0
      %455 = vmatpush2.bf16.msra.mxu0 0
      %456 = vmatprep.subr.bf16.mxu0 0
      %457 = vmatpush2.bf16.msra.mxu0 0
      %458 = vmatprep.subr.bf16.mxu0 0
      %459 = vmatpush2.bf16.msra.mxu0 0
      %460 = vmatprep.mubr.bf16.mxu0 0
      %461 = vmatmul.mubr.bf16.gmra.mxu0 %v356
      %v462 = vpop.f32.mrf.mxu0
      %v463 = vadd.f32 %v378, %v462
      %v464 = vpop.f32.mrf.mxu0
      %v465 = vpop.f32.mrf.mxu0
      %v466 = vpop.f32.mrf.mxu0
      %467 = vdwg.mxu0
      %v468 = vpack.c.bf16 %v463, %v463
      %v469 = vtanh.bf16.pop %v468
      %v470 = vld [vmem:[#allocation9] sm:$0xf]
      %v471 = vld [vmem:[#allocation9 + $0x4] sm:$0xf]
      %v472 = vld [vmem:[#allocation9 + $0x8] sm:$0xf]
      %v473 = vld [vmem:[#allocation9 + $0xc] sm:$0xf]
      %v474 = vld [vmem:[#allocation9 + $0x10] sm:$0xf]
      %v475 = vld [vmem:[#allocation9 + $0x14] sm:$0xf]
      %v476 = vld [vmem:[#allocation9 + $0x18] sm:$0xf]
      %v477 = vld [vmem:[#allocation9 + $0x1c] sm:$0xf]
      %v478 = vld [vmem:[#allocation9 + $0x20] sm:$0xf]
      %v479 = vld [vmem:[#allocation9 + $0x24] sm:$0xf]
      %v480 = vld [vmem:[#allocation9 + $0x28] sm:$0xf]
      %v481 = vld [vmem:[#allocation9 + $0x2c] sm:$0xf]
      %v482 = vld [vmem:[#allocation9 + $0x30] sm:$0xf]
      %v483 = vld [vmem:[#allocation9 + $0x34] sm:$0xf]
      %v484 = vld [vmem:[#allocation9 + $0x38] sm:$0xf]
      %v485 = vld [vmem:[#allocation9 + $0x3c] sm:$0xf]
      %v486 = vld [vmem:[%s6] sm:$0x1]
      %v488 = vlaneseq
      %v489 = vshrl.u32 %v488, 7
      %v490 = vsub.s32 0, %v489
      %v491 = vrot.slane %v486, %v490
      %v509 = vunpack.c.l.b16 %v470
      %v510 = vunpack.c.l.b16 %v471
      %v511 = vunpack.c.l.b16 %v472
      %v512 = vunpack.c.l.b16 %v473
      %v513 = vunpack.c.l.b16 %v474
      %v514 = vunpack.c.l.b16 %v475
      %v515 = vunpack.c.l.b16 %v476
      %v516 = vunpack.c.l.b16 %v477
      %v517 = vunpack.c.l.b16 %v478
      %v518 = vunpack.c.l.b16 %v479
      %v519 = vunpack.c.l.b16 %v480
      %v520 = vunpack.c.l.b16 %v481
      %v521 = vunpack.c.l.b16 %v482
      %v522 = vunpack.c.l.b16 %v483
      %v523 = vunpack.c.l.b16 %v484
      %v524 = vunpack.c.l.b16 %v485
      %v525 = vpack.c.b16 %v510, %v509
      %v526 = vpack.c.b16 %v512, %v511
      %v527 = vpack.c.b16 %v514, %v513
      %v528 = vpack.c.b16 %v516, %v515
      %v529 = vpack.c.b16 %v518, %v517
      %v530 = vpack.c.b16 %v520, %v519
      %v531 = vpack.c.b16 %v522, %v521
      %v532 = vpack.c.b16 %v524, %v523
      %541 = vmatprep.subr.bf16.mxu0 0
      %542 = vmatpush1.bf16.msra.mxu0 %v532
      %543 = vmatprep.subr.bf16.mxu0 0
      %544 = vmatpush1.bf16.msra.mxu0 %v531
      %545 = vmatprep.subr.bf16.mxu0 0
      %546 = vmatpush1.bf16.msra.mxu0 %v530
      %547 = vmatprep.subr.bf16.mxu0 0
      %548 = vmatpush1.bf16.msra.mxu0 %v529
      %549 = vmatprep.subr.bf16.mxu0 0
      %550 = vmatpush1.bf16.msra.mxu0 %v528
      %551 = vmatprep.subr.bf16.mxu0 0
      %552 = vmatpush1.bf16.msra.mxu0 %v527
      %553 = vmatprep.subr.bf16.mxu0 0
      %554 = vmatpush1.bf16.msra.mxu0 %v526
      %555 = vmatprep.subr.bf16.mxu0 0
      %556 = vmatpush1.bf16.msra.mxu0 %v525
      %557 = vmatprep.subr.bf16.mxu0 0
      %558 = vmatpush2.bf16.msra.mxu0 0
      %559 = vmatprep.subr.bf16.mxu0 0
      %560 = vmatpush2.bf16.msra.mxu0 0
      %561 = vmatprep.subr.bf16.mxu0 0
      %562 = vmatpush2.bf16.msra.mxu0 0
      %563 = vmatprep.subr.bf16.mxu0 0
      %564 = vmatpush2.bf16.msra.mxu0 0
      %565 = vmatprep.subr.bf16.mxu0 0
      %566 = vmatpush2.bf16.msra.mxu0 0
      %567 = vmatprep.subr.bf16.mxu0 0
      %568 = vmatpush2.bf16.msra.mxu0 0
      %569 = vmatprep.subr.bf16.mxu0 0
      %570 = vmatpush2.bf16.msra.mxu0 0
      %571 = vmatprep.subr.bf16.mxu0 0
      %572 = vmatpush2.bf16.msra.mxu0 0
      %573 = vmatprep.mubr.bf16.mxu0 0
      %574 = vmatmul.mubr.bf16.gmra.mxu0 %v469
      %v575 = vpop.f32.mrf.mxu0
      %v576 = vadd.f32 %v491, %v575
      %v577 = vpop.f32.mrf.mxu0
      %v578 = vpop.f32.mrf.mxu0
      %v579 = vpop.f32.mrf.mxu0
      %580 = vdwg.mxu0
      %581 = vst [vmem:[#allocation11] sm:$0xff] %v576
      %582 = vmax.xlane.f32.xlu0 %v576
      %v583 = vpop.xlane.xlu0 %582
      %v584 = vsub.f32 %v576, %v583
      %v585 = vmul.f32 %v584, 1.442695
      %v586 = vpow.pop %v585
      %587 = vadd.xlane.f32.xlu0 %v586
      %v588 = vpop.xlane.xlu0 %587
      %v589 = vlog2.pop %v588
      %v590 = vmul.f32 %v589, 0.6931472
      %v591 = vsub.f32 %v584, %v590
      %v592 = vld [vmem:[%s7] sm:$0xff]
      %v593 = vmul.f32 %v592, %v591
      %594 = vadd.xlane.f32.xlu0 %v593
      %v595 = vpop.xlane.xlu0 %594
      %v596 = vsub.f32 0.0, %v595
      %vm597 = vcmask 7168
      %598 = vst.msk [vmem:[%s9] sm:$0xff] %vm597, %v596
    $region57: #{tpu_custom_call.1} parent=1 // pred_fallthru
      _
    // Predicated region
    $region58: #{tpu_custom_call.1} parent=1 // pred_check
      _
    $region59: #{tpu_custom_call.1} parent=1 // pred_check_branch
      %600 = sbr.rel (0) target = $region61
    $region60: #{tpu_custom_call.1} parent=1 // pred_region
      %s602 = ssub.s32 128, 128
      %603 = vsyncadd [#allocation5], %s602
      %s605 = sshll.u32 [#allocation11], 4
      %s606 = int_to_ptr.vmem [resolvable:$true] %s605
      %608 = dma.vmem_to_hbm [thread:$0]  %s606, 128, %s8, [#allocation5]
    $region61: #{tpu_custom_call.1} parent=1 // pred_fallthru
      _
    // Predicated region
    $region62: #{tpu_custom_call.1} parent=1 // pred_check
      _
    $region63: #{tpu_custom_call.1} parent=1 // pred_check_branch
      %610 = sbr.rel (0) target = $region65
    $region64: #{tpu_custom_call.1} parent=1 // pred_region
      _
    $region65: #{tpu_custom_call.1} parent=1 // pred_fallthru
      _
    // Predicated region
    $region66: #{tpu_custom_call.1} parent=1 // pred_check
      _
    $region67: #{tpu_custom_call.1} parent=1 // pred_check_branch
      %612 = sbr.rel (0) target = $region69
    $region68: #{tpu_custom_call.1} parent=1 // pred_region
      %613 = dma.done [#allocation5], 128
    $region69: #{tpu_custom_call.1} parent=1 // pred_fallthru
      _
    // Predicated region
    $region70: #{tpu_custom_call.1} parent=1 // pred_check
      _
    $region71: #{tpu_custom_call.1} parent=1 // pred_check_branch
      %615 = sbr.rel (0) target = $region73
    $region72: #{tpu_custom_call.1} parent=1 // pred_region
      _
    $region73: #{tpu_custom_call.1} parent=1 // pred_fallthru
      _
    %616 = vsyncpa [#allocation4], 1
    %617 = vsyncpa [#allocation7], 1
    %618 = vsyncpa [#allocation10], 1
    %619 = vsyncpa [#allocation5], 1

</llo_original>
